<compile_context>
chip_gen: v6e
topology: v6e:2x2x1
jax: 0.10.0
libtpu: 0.0.40
codegen_flags: <defaults>
</compile_context>

<pallas_src>
import functools

import jax
import jax.numpy as jnp
from jax.experimental import pallas as pl
from jax.experimental.pallas import tpu as pltpu


def _round_up(a: int, m: int) -> int:
    return ((a + m - 1) // m) * m


def _vmem_capacity_bytes() -> int:
    """Physical VMEM bytes (per core); conservative v7x fallback."""
    try:
        info = pltpu.get_tpu_info()
        cap = getattr(info, "vmem_capacity_bytes", None)
        if cap:
            return int(cap)
    except Exception:
        pass
    return 64 * 1024 * 1024


def masked_linear_kernel(x_ref, wt_ref, b_ref, o_ref, acc_ref):
    """One (tm, tn) output tile, accumulated over the K grid axis (axis 2)."""
    k = pl.program_id(2)

    @pl.when(k == 0)
    def _():
        # Fold the bias into the accumulator init: (1, tn) broadcasts to (tm, tn).
        acc_ref[...] = jnp.broadcast_to(b_ref[...].astype(jnp.float32),
                                        acc_ref.shape)

    # Operands already arrive masked and in the compute dtype (cast in wrapper).
    acc_ref[...] += jnp.dot(x_ref[...], wt_ref[...],
                            preferred_element_type=jnp.float32)

    @pl.when(k == pl.num_programs(2) - 1)
    def _():
        o_ref[...] = acc_ref[...].astype(o_ref.dtype)


@functools.partial(jax.jit,
                   static_argnames=("tm", "tn", "tk", "compute_dtype"))
def masked_linear(x, weight, mask, bias=None, *,
                  tm=256, tn=1024, tk=1024, compute_dtype=jnp.bfloat16):
    """y = x @ (weight.T * mask) + bias.

    x:      (B, in_features)
    weight: (out_features, in_features)   -- PyTorch nn.Linear layout
    mask:   (in_features, out_features)   -- bool (or 0/1)
    bias:   (out_features,) or None
    compute_dtype: MXU operand dtype (default bf16; None => use x.dtype, strict f32).
    """
    B, K = x.shape
    N, K2 = weight.shape
    assert K == K2 and mask.shape == (K, N)

    out_dtype = x.dtype
    if bias is None:
        bias = jnp.zeros((N,), dtype=jnp.float32)

    # ---- Glue (plain XLA, once per call): mask the transposed weight, cast. ----
    # TODO(synk): if mask/weight are reused across many calls, hoist/cache this
    # pre-masked (and pre-cast) weight outside the per-call path.
    masked_wt = weight.T * mask.astype(weight.dtype)          # (K, N)
    bias_row = bias.reshape(1, N).astype(jnp.float32)
    if compute_dtype is not None:
        x = x.astype(compute_dtype)
        masked_wt = masked_wt.astype(compute_dtype)

    x_itemsize = jnp.dtype(x.dtype).itemsize
    w_itemsize = jnp.dtype(masked_wt.dtype).itemsize
    o_itemsize = jnp.dtype(out_dtype).itemsize

    # ---- Tile clamps: dtype-aware sublane minimum, lane alignment. ----
    min_sublane = max(8, 32 // x_itemsize)          # 8 f32, 16 bf16, 32 int8
    tm = max(min_sublane, min(tm, _round_up(B, min_sublane)))
    Np0 = _round_up(N, 128)
    Kp0 = _round_up(K, 128)
    tn = max(128, min(tn, Np0))
    tk = max(128, min(tk, Kp0))

    # v7x megacore: if the batch axis collapses to a single tile, keep >= 2
    # tiles along N so the two "parallel" grid axes can shard across both TCs.
    if B <= tm and tn >= Np0 and Np0 >= 256:
        tn = max(128, _round_up(Np0 // 2, 128))

    # ---- Zero-pad to tile multiples so partial tiles are exact. ----
    Bp, Np, Kp = _round_up(B, tm), _round_up(N, tn), _round_up(K, tk)
    if (Bp, Kp) != (B, K):
        x = jnp.pad(x, ((0, Bp - B), (0, Kp - K)))
    if (Kp, Np) != (K, N):
        masked_wt = jnp.pad(masked_wt, ((0, Kp - K), (0, Np - N)))
    if Np != N:
        bias_row = jnp.pad(bias_row, ((0, 0), (0, Np - N)))

    grid = (Bp // tm, Np // tn, Kp // tk)

    # ---- VMEM budget: double-buffered streams + f32 accumulator. ----
    vmem_needed = (2 * tm * tk * x_itemsize          # x tiles
                   + 2 * tk * tn * w_itemsize        # masked-weight tiles
                   + 2 * 1 * tn * 4                  # bias tiles
                   + 2 * tm * tn * o_itemsize        # output tiles
                   + tm * tn * 4)                    # f32 accumulator
    vmem_cap = _vmem_capacity_bytes()                # 128 MiB v5e/v6e, 64 MiB v7x
    vmem_limit = int(min(max(2 * vmem_needed, 32 * 1024 * 1024),
                         (vmem_cap * 3) // 4))

    out_padded = pl.pallas_call(
        masked_linear_kernel,
        out_shape=jax.ShapeDtypeStruct((Bp, Np), out_dtype),
        grid_spec=pltpu.PrefetchScalarGridSpec(
            num_scalar_prefetch=0,
            grid=grid,
            in_specs=[
                pl.BlockSpec((tm, tk), lambda i, j, k: (i, k)),   # x tile
                pl.BlockSpec((tk, tn), lambda i, j, k: (k, j)),   # masked W^T tile
                pl.BlockSpec((1, tn), lambda i, j, k: (0, j)),    # bias tile
            ],
            out_specs=pl.BlockSpec((tm, tn), lambda i, j, k: (i, j)),
            scratch_shapes=[pltpu.VMEM((tm, tn), jnp.float32)],
        ),
        compiler_params=pltpu.CompilerParams(
            dimension_semantics=("parallel", "parallel", "arbitrary"),
            vmem_limit_bytes=vmem_limit),
    )(x, masked_wt, bias_row)

    if (Bp, Np) != (B, N):
        out_padded = out_padded[:B, :N]
    return out_padded


def _reference(x, weight, mask, bias):
    masked_w = weight.T * mask.astype(x.dtype)
    y = jnp.matmul(x, masked_w, precision=jax.lax.Precision.HIGHEST)
    return y + bias[None, :]


if __name__ == "__main__":
    key = jax.random.PRNGKey(0)

    # --- Test 1: strict f32 path, tile-aligned shapes (MaskedLinear usage). ---
    batch, in_features, out_features = 16, 256, 128
    kx, kw, kb, km, key = jax.random.split(key, 5)
    bound = 1.0 / jnp.sqrt(jnp.float32(in_features))
    x = jax.random.normal(kx, (batch, in_features), dtype=jnp.float32)
    weight = jax.random.uniform(kw, (out_features, in_features),
                                minval=-bound, maxval=bound, dtype=jnp.float32)
    bias = jax.random.uniform(kb, (out_features,),
                              minval=-bound, maxval=bound, dtype=jnp.float32)
    # ~50% sparse random mask, like MaskedLinear.sparse_random(percent=0.5).
    mask = jax.random.bernoulli(km, p=0.5, shape=(in_features, out_features))

    y = jax.block_until_ready(masked_linear(x, weight, mask, bias,
                                            compute_dtype=None))
    y_ref = _reference(x, weight, mask, bias)
    assert y.shape == (batch, out_features)
    assert jnp.allclose(y, y_ref, atol=1e-4, rtol=1e-4), \
        "mismatch vs reference (test 1, f32)"

    # --- Test 2: default bf16 MXU path, non-tile-multiple shapes (padding). ---
    batch2, in2, out2 = 200, 300, 260
    kx, kw, kb, km, key = jax.random.split(key, 5)
    bound2 = 1.0 / jnp.sqrt(jnp.float32(in2))
    x2 = jax.random.normal(kx, (batch2, in2), dtype=jnp.float32)
    w2 = jax.random.uniform(kw, (out2, in2), minval=-bound2, maxval=bound2,
                            dtype=jnp.float32)
    b2 = jax.random.uniform(kb, (out2,), minval=-bound2, maxval=bound2,
                            dtype=jnp.float32)
    m2 = jax.random.bernoulli(km, p=0.5, shape=(in2, out2))

    y2 = jax.block_until_ready(masked_linear(x2, w2, m2, b2))   # bf16 compute
    y2_ref = _reference(x2, w2, m2, b2)
    assert y2.shape == (batch2, out2)
    # bf16 operand quantization => looser tolerance (expected, not a kernel bug).
    assert jnp.allclose(y2, y2_ref, atol=3e-2, rtol=3e-2), \
        "mismatch vs reference (test 2, bf16)"

    print("KERNEL_OK")
</pallas_src>

<mosaic_0001>
module attributes {stable_mosaic.version = 11 : i64} {
  func.func @masked_linear_kernel(%arg0: i32, %arg1: i32, %arg2: i32, %arg3: memref<16x256xf32, #tpu.memory_space<vmem>>, %arg4: memref<256x128xf32, #tpu.memory_space<vmem>>, %arg5: memref<1x128xf32, #tpu.memory_space<vmem>>, %arg6: memref<16x128xf32, #tpu.memory_space<vmem>>, %arg7: memref<16x128xf32, #tpu.memory_space<vmem>>) attributes {dimension_semantics = [#tpu.dimension_semantics<parallel>, #tpu.dimension_semantics<parallel>, #tpu.dimension_semantics<arbitrary>], iteration_bounds = array<i64: 1, 1, 1>, scalar_prefetch = 0 : i64, scratch_operands = 1 : i64, tpu.core_type = #tpu.core_type<tc>, window_params = [{transform_indices = @transform_0, window_bounds = array<i64: 16, 256>}, {transform_indices = @transform_1, window_bounds = array<i64: 256, 128>}, {transform_indices = @transform_2, window_bounds = array<i64: 1, 128>}, {transform_indices = @transform_3, window_bounds = array<i64: 16, 128>}]} {
    %c0_i32 = arith.constant 0 : i32
    %0 = arith.cmpi eq, %arg2, %c0_i32 : i32
    %1 = arith.extui %0 : i1 to i32
    %c0_i32_0 = arith.constant 0 : i32
    %2 = arith.cmpi ne, %1, %c0_i32_0 : i32
    scf.if %2 {
      %c0_10 = arith.constant 0 : index
      %c0_11 = arith.constant 0 : index
      %12 = vector.load %arg5[%c0_10, %c0_11] : memref<1x128xf32, #tpu.memory_space<vmem>>, vector<1x128xf32>
      %13 = vector.shape_cast %12 : vector<1x128xf32> to vector<1x128xf32>
      %14 = vector.broadcast %13 : vector<1x128xf32> to vector<16x128xf32>
      %c0_12 = arith.constant 0 : index
      %c0_13 = arith.constant 0 : index
      %15 = vector.load %arg7[%c0_12, %c0_13] : memref<16x128xf32, #tpu.memory_space<vmem>>, vector<16x128xf32>
      tpu.vector_store %arg7[%c0_12, %c0_13], %14 {strides = array<i32>} : memref<16x128xf32, #tpu.memory_space<vmem>>, vector<16x128xf32>,
    } else {
    }
    %c0 = arith.constant 0 : index
    %c0_1 = arith.constant 0 : index
    %3 = vector.load %arg7[%c0, %c0_1] : memref<16x128xf32, #tpu.memory_space<vmem>>, vector<16x128xf32>
    %c0_2 = arith.constant 0 : index
    %c0_3 = arith.constant 0 : index
    %4 = vector.load %arg3[%c0_2, %c0_3] : memref<16x256xf32, #tpu.memory_space<vmem>>, vector<16x256xf32>
    %c0_4 = arith.constant 0 : index
    %c0_5 = arith.constant 0 : index
    %5 = vector.load %arg4[%c0_4, %c0_5] : memref<256x128xf32, #tpu.memory_space<vmem>>, vector<256x128xf32>
    %cst = arith.constant dense<0.000000e+00> : vector<16x128xf32>
    %6 = tpu.matmul %4, %5, %cst {dimension_numbers = #tpu.dot_dimension_numbers<[1], [0], [0], [1], [0, 0, 1, 1], [], []>} : vector<16x256xf32>, vector<256x128xf32>, vector<16x128xf32> -> vector<16x128xf32>
    %7 = arith.addf %3, %6 : vector<16x128xf32>
    %c0_6 = arith.constant 0 : index
    %c0_7 = arith.constant 0 : index
    %8 = vector.load %arg7[%c0_6, %c0_7] : memref<16x128xf32, #tpu.memory_space<vmem>>, vector<16x128xf32>
    tpu.vector_store %arg7[%c0_6, %c0_7], %7 {strides = array<i32>} : memref<16x128xf32, #tpu.memory_space<vmem>>, vector<16x128xf32>,
    %c0_i32_8 = arith.constant 0 : i32
    %9 = arith.cmpi eq, %arg2, %c0_i32_8 : i32
    %10 = arith.extui %9 : i1 to i32
    %c0_i32_9 = arith.constant 0 : i32
    %11 = arith.cmpi ne, %10, %c0_i32_9 : i32
    scf.if %11 {
      %c0_10 = arith.constant 0 : index
      %c0_11 = arith.constant 0 : index
      %12 = vector.load %arg7[%c0_10, %c0_11] : memref<16x128xf32, #tpu.memory_space<vmem>>, vector<16x128xf32>
      %c0_12 = arith.constant 0 : index
      %c0_13 = arith.constant 0 : index
      %13 = vector.load %arg6[%c0_12, %c0_13] : memref<16x128xf32, #tpu.memory_space<vmem>>, vector<16x128xf32>
      tpu.vector_store %arg6[%c0_12, %c0_13], %12 {strides = array<i32>} : memref<16x128xf32, #tpu.memory_space<vmem>>, vector<16x128xf32>,
    } else {
    }
    return
  }
  func.func @transform_0(%arg0: i32, %arg1: i32, %arg2: i32) -> (i32, i32) {
    %c0_i32 = arith.constant 0 : i32
    return %arg0, %arg2 : i32, i32
  }
  func.func @transform_1(%arg0: i32, %arg1: i32, %arg2: i32) -> (i32, i32) {
    %c0_i32 = arith.constant 0 : i32
    return %arg2, %arg1 : i32, i32
  }
  func.func @transform_2(%arg0: i32, %arg1: i32, %arg2: i32) -> (i32, i32) {
    %c0_i32 = arith.constant 0 : i32
    %c0_i32_0 = arith.constant 0 : i32
    return %c0_i32, %arg1 : i32, i32
  }
  func.func @transform_3(%arg0: i32, %arg1: i32, %arg2: i32) -> (i32, i32) {
    %c0_i32 = arith.constant 0 : i32
    return %arg0, %arg1 : i32, i32
  }
}

</mosaic_0001>

<llo_original>
// kernel: masked_linear.1
$region0: #{masked_linear.1}
  #allocation0 [shape = 'u32[]', space=smem, size = 0x4, offset = 0x4, fixed_abs, tag = 'smem constant byte address 0x4 - core index']
  #allocation1 [shape = 'u32[144,128]{1,0:T(1,128)}', space=vmem, size = 0x12000, scoped, tag = 'internal scratch']
  #allocation2 [shape = 'f32[16,128]{1,0:T(8,128)}', space=vmem, size = 0x2000, scoped, tag = 'scratch operand']
  %s0 = inlined_call_operand.vmem [shape: f32[16,256], index: 0, kind: input, shape index: {}]
  %s1 = inlined_call_operand.vmem [shape: f32[256,128], index: 1, kind: input, shape index: {}]
  %s2 = inlined_call_operand.vmem [shape: f32[1,128], index: 2, kind: input, shape index: {}]
  %s3 = inlined_call_operand.hbm [shape: f32[16,128], index: 3, kind: output, shape index: {}]
  %s4 = sld [smem:[#allocation0]]
  $region30: #{masked_linear.1} parent=0
    _
  %s6 = ssub.s32 1, %s4
  %s7 = scalar_select 0, %s6, %s4
  $region1: #{masked_linear.1} parent=0
    #allocation3 [shape = 'u8[8192]{0}', space=vmem, size = 0x2000, scoped, tag = 'output window, operand 0, single buffered']
    #allocation4 [shape = 's32[1]{0}', space=sflag, size = 0x4, scoped, tag = 'scoped memory for masked_linear.1']
    %8 = vsyncpa [#allocation4], 0
    // Predicated region
    $region2: #{masked_linear.1} parent=1 // pred_check
      _
    $region3: #{masked_linear.1} parent=1 // pred_check_branch
      %10 = sbr.rel (0) target = $region5
    $region4: #{masked_linear.1} parent=1 // pred_region
      _
    $region5: #{masked_linear.1} parent=1 // pred_fallthru
      _
    // Predicated region
    $region6: #{masked_linear.1} parent=1 // pred_check
      _
    $region7: #{masked_linear.1} parent=1 // pred_check_branch
      %12 = sbr.rel (0) target = $region9
    $region8: #{masked_linear.1} parent=1 // pred_region
      _
    $region9: #{masked_linear.1} parent=1 // pred_fallthru
      _
    // Predicated region
    $region10: #{masked_linear.1} parent=1 // pred_check
      _
    $region11: #{masked_linear.1} parent=1 // pred_check_branch
      %14 = sbr.rel (0) target = $region13
    $region12: #{masked_linear.1} parent=1 // pred_region
      _
    $region13: #{masked_linear.1} parent=1 // pred_fallthru
      _
    %p15 = scmp.eq.s32.totalorder 0, 0
    // Predicated region
    $region14: #{masked_linear.1} parent=1 // pred_check
      %p16 = pneg %p15
    $region15: #{masked_linear.1} parent=1 // pred_check_branch
      %18 = sbr.rel (%p16) target = $region17
    $region16: #{masked_linear.1} parent=1 // pred_region
      %v19 = vld [vmem:[%s2] sm:$0x1]
      %v21 = vlaneseq
      %v22 = vshrl.u32 %v21, 7
      %v23 = vsub.s32 0, %v22
      %v24 = vrot.slane %v19, %v23
      %26 = vst [vmem:[#allocation2] sm:$0xff] %v24
      %27 = vst [vmem:[#allocation2 + $0x8] sm:$0xff] %v24
    $region17: #{masked_linear.1} parent=1 // pred_fallthru
      _
    %v28 = vld [vmem:[#allocation2] sm:$0xff]
    %v29 = vld [vmem:[#allocation2 + $0x8] sm:$0xff]
    %v30 = vld [vmem:[%s0] sm:$0xff]
    %v31 = vld [vmem:[%s0 + $0x8] sm:$0xff]
    %v32 = vld [vmem:[%s0 + $0x10] sm:$0xff]
    %v33 = vld [vmem:[%s0 + $0x18] sm:$0xff]
    %v34 = vld [vmem:[%s1] sm:$0xff]
    %v35 = vld [vmem:[%s1 + $0x8] sm:$0xff]
    %v36 = vld [vmem:[%s1 + $0x10] sm:$0xff]
    %v37 = vld [vmem:[%s1 + $0x18] sm:$0xff]
    %v38 = vld [vmem:[%s1 + $0x20] sm:$0xff]
    %v39 = vld [vmem:[%s1 + $0x28] sm:$0xff]
    %v40 = vld [vmem:[%s1 + $0x30] sm:$0xff]
    %v41 = vld [vmem:[%s1 + $0x38] sm:$0xff]
    %v42 = vld [vmem:[%s1 + $0x40] sm:$0xff]
    %v43 = vld [vmem:[%s1 + $0x48] sm:$0xff]
    %v44 = vld [vmem:[%s1 + $0x50] sm:$0xff]
    %v45 = vld [vmem:[%s1 + $0x58] sm:$0xff]
    %v46 = vld [vmem:[%s1 + $0x60] sm:$0xff]
    %v47 = vld [vmem:[%s1 + $0x68] sm:$0xff]
    %v48 = vld [vmem:[%s1 + $0x70] sm:$0xff]
    %v49 = vld [vmem:[%s1 + $0x78] sm:$0xff]
    %v50 = vld [vmem:[%s1 + $0x80] sm:$0xff]
    %v51 = vld [vmem:[%s1 + $0x88] sm:$0xff]
    %v52 = vld [vmem:[%s1 + $0x90] sm:$0xff]
    %v53 = vld [vmem:[%s1 + $0x98] sm:$0xff]
    %v54 = vld [vmem:[%s1 + $0xa0] sm:$0xff]
    %v55 = vld [vmem:[%s1 + $0xa8] sm:$0xff]
    %v56 = vld [vmem:[%s1 + $0xb0] sm:$0xff]
    %v57 = vld [vmem:[%s1 + $0xb8] sm:$0xff]
    %v58 = vld [vmem:[%s1 + $0xc0] sm:$0xff]
    %v59 = vld [vmem:[%s1 + $0xc8] sm:$0xff]
    %v60 = vld [vmem:[%s1 + $0xd0] sm:$0xff]
    %v61 = vld [vmem:[%s1 + $0xd8] sm:$0xff]
    %v62 = vld [vmem:[%s1 + $0xe0] sm:$0xff]
    %v63 = vld [vmem:[%s1 + $0xe8] sm:$0xff]
    %v64 = vld [vmem:[%s1 + $0xf0] sm:$0xff]
    %v65 = vld [vmem:[%s1 + $0xf8] sm:$0xff]
    %66 = vmatprep.subr.mxu0 0.0
    %67 = vmatpush1.msra.mxu0 %v49
    %68 = vmatprep.subr.mxu0 0.0
    %69 = vmatpush1.msra.mxu0 %v48
    %70 = vmatprep.subr.mxu0 0.0
    %71 = vmatpush1.msra.mxu0 %v47
    %72 = vmatprep.subr.mxu0 0.0
    %73 = vmatpush1.msra.mxu0 %v46
    %74 = vmatprep.subr.mxu0 0.0
    %75 = vmatpush1.msra.mxu0 %v45
    %76 = vmatprep.subr.mxu0 0.0
    %77 = vmatpush1.msra.mxu0 %v44
    %78 = vmatprep.subr.mxu0 0.0
    %79 = vmatpush1.msra.mxu0 %v43
    %80 = vmatprep.subr.mxu0 0.0
    %81 = vmatpush1.msra.mxu0 %v42
    %82 = vmatprep.subr.mxu0 0.0
    %83 = vmatpush1.msra.mxu0 %v41
    %84 = vmatprep.subr.mxu0 0.0
    %85 = vmatpush1.msra.mxu0 %v40
    %86 = vmatprep.subr.mxu0 0.0
    %87 = vmatpush1.msra.mxu0 %v39
    %88 = vmatprep.subr.mxu0 0.0
    %89 = vmatpush1.msra.mxu0 %v38
    %90 = vmatprep.subr.mxu0 0.0
    %91 = vmatpush1.msra.mxu0 %v37
    %92 = vmatprep.subr.mxu0 0.0
    %93 = vmatpush1.msra.mxu0 %v36
    %94 = vmatprep.subr.mxu0 0.0
    %95 = vmatpush1.msra.mxu0 %v35
    %96 = vmatprep.subr.mxu0 0.0
    %97 = vmatpush1.msra.mxu0 %v34
    %98 = vmatprep.subr.mxu0 0.0
    %99 = vmatpush2.msra.mxu0 %v65
    %100 = vmatprep.subr.mxu0 0.0
    %101 = vmatpush2.msra.mxu0 %v64
    %102 = vmatprep.subr.mxu0 0.0
    %103 = vmatpush2.msra.mxu0 %v63
    %104 = vmatprep.subr.mxu0 0.0
    %105 = vmatpush2.msra.mxu0 %v62
    %106 = vmatprep.subr.mxu0 0.0
    %107 = vmatpush2.msra.mxu0 %v61
    %108 = vmatprep.subr.mxu0 0.0
    %109 = vmatpush2.msra.mxu0 %v60
    %110 = vmatprep.subr.mxu0 0.0
    %111 = vmatpush2.msra.mxu0 %v59
    %112 = vmatprep.subr.mxu0 0.0
    %113 = vmatpush2.msra.mxu0 %v58
    %114 = vmatprep.subr.mxu0 0.0
    %115 = vmatpush2.msra.mxu0 %v57
    %116 = vmatprep.subr.mxu0 0.0
    %117 = vmatpush2.msra.mxu0 %v56
    %118 = vmatprep.subr.mxu0 0.0
    %119 = vmatpush2.msra.mxu0 %v55
    %120 = vmatprep.subr.mxu0 0.0
    %121 = vmatpush2.msra.mxu0 %v54
    %122 = vmatprep.subr.mxu0 0.0
    %123 = vmatpush2.msra.mxu0 %v53
    %124 = vmatprep.subr.mxu0 0.0
    %125 = vmatpush2.msra.mxu0 %v52
    %126 = vmatprep.subr.mxu0 0.0
    %127 = vmatpush2.msra.mxu0 %v51
    %128 = vmatprep.subr.mxu0 0.0
    %129 = vmatpush2.msra.mxu0 %v50
    %130 = vmatprep.mubr.f32.mxu0 %v31
    %131 = vmatmul.mubr.f32.gmra.mxu0 %v30
    %v132 = vpop.f32.mrf.mxu0
    %v133 = vadd.f32 0.0, %v132
    %v134 = vpop.f32.mrf.mxu0
    %135 = vmatprep.mubr.f32.mxu0 %v33
    %136 = vmatmul.mubr.f32.gmra.mxu0 %v32
    %v137 = vpop.f32.mrf.mxu0
    %v138 = vadd.f32 0.0, %v137
    %v139 = vpop.f32.mrf.mxu0
    %140 = vdwg.mxu0
    %v141 = vadd.f32 %v28, %v133
    %v142 = vadd.f32 %v29, %v138
    %143 = vst [vmem:[#allocation2] sm:$0xff] %v141
    %144 = vst [vmem:[#allocation2 + $0x8] sm:$0xff] %v142
    // Predicated region
    $region18: #{masked_linear.1} parent=1 // pred_check
      %p145 = pneg %p15
    $region19: #{masked_linear.1} parent=1 // pred_check_branch
      %147 = sbr.rel (%p145) target = $region21
    $region20: #{masked_linear.1} parent=1 // pred_region
      %v148 = vld [vmem:[#allocation2] sm:$0xff]
      %v149 = vld [vmem:[#allocation2 + $0x8] sm:$0xff]
      %150 = vst [vmem:[#allocation3] sm:$0xff] %v148
      %151 = vst [vmem:[#allocation3 + $0x8] sm:$0xff] %v149
    $region21: #{masked_linear.1} parent=1 // pred_fallthru
      _
    // Predicated region
    $region22: #{masked_linear.1} parent=1 // pred_check
      _
    $region23: #{masked_linear.1} parent=1 // pred_check_branch
      %153 = sbr.rel (0) target = $region25
    $region24: #{masked_linear.1} parent=1 // pred_region
      %s155 = ssub.s32 256, 256
      %156 = vsyncadd [#allocation4], %s155
      %s157 = sshll.u32 [#allocation3], 4
      %s158 = int_to_ptr.vmem [resolvable:$true] %s157
      %163 = dma.vmem_to_hbm [thread:$0]  %s158, 256, %s3, [#allocation4], 128, 128, 8
    $region25: #{masked_linear.1} parent=1 // pred_fallthru
      _
    // Predicated region
    $region26: #{masked_linear.1} parent=1 // pred_check
      _
    $region27: #{masked_linear.1} parent=1 // pred_check_branch
      %165 = sbr.rel (0) target = $region29
    $region28: #{masked_linear.1} parent=1 // pred_region
      %166 = dma.done [#allocation4], 256
    $region29: #{masked_linear.1} parent=1 // pred_fallthru
      _
    %167 = vsyncpa [#allocation4], 1

</llo_original>
